<compile_context>
chip_gen: v5e
topology: v5e:2x2
jax: 0.10.0
libtpu: 0.0.40
codegen_flags: <defaults>
</compile_context>

<pallas_src>
from typing import NamedTuple

import jax
import jax.numpy as jnp
from jax.experimental import pallas as pl
from jax.experimental.pallas import tpu as pltpu

LANE = 128      # lane width: contraction / output dims padded to multiples
SUBLANE = 8     # sublane width: row tiles are multiples of this
MXU_M = 256     # don't shrink row tiles below this (keeps the MXU fed)


def _round_up(v, m):
    return ((v + m - 1) // m) * m


def _cdiv(a, b):
    return -(-a // b)


def _vmem_capacity_bytes():
    """Physical VMEM per core; falls back to v7x's 64 MiB if unqueryable."""
    try:
        cap = getattr(pltpu.get_tpu_info(), "vmem_capacity_bytes", None)
        if cap:
            return int(cap)
    except Exception:
        pass
    return 64 * 1024 * 1024


# ---------------------------------------------------------------------------
# Kernels
# ---------------------------------------------------------------------------

def _mlp_kernel_resident(x_ref, w1_ref, b1_ref, w2_ref, b2_ref, o_ref):
    """Both weight matrices VMEM-resident; one row tile per grid step."""
    h = jnp.dot(x_ref[...], w1_ref[...], preferred_element_type=jnp.float32)
    h = jnp.maximum(h + b1_ref[...], 0.0)                    # bias/ReLU in f32
    y = jnp.dot(h.astype(w2_ref.dtype), w2_ref[...],
                preferred_element_type=jnp.float32)
    o_ref[...] = (y + b2_ref[...]).astype(o_ref.dtype)


def _mlp_kernel_hblocked(x_ref, w1_ref, b1_ref, w2_ref, b2_ref, o_ref, acc_ref):
    """Hidden dim streamed in blocks; f32 accumulator in scratch (init/finalize
    via pl.when). ReLU is elementwise over hidden so per-block ReLU is exact."""
    k = pl.program_id(1)

    @pl.when(k == 0)
    def _():
        acc_ref[...] = jnp.zeros_like(acc_ref)

    h = jnp.dot(x_ref[...], w1_ref[...], preferred_element_type=jnp.float32)
    h = jnp.maximum(h + b1_ref[...], 0.0)
    acc_ref[...] += jnp.dot(h.astype(w2_ref.dtype), w2_ref[...],
                            preferred_element_type=jnp.float32)

    @pl.when(k == pl.num_programs(1) - 1)
    def _():
        o_ref[...] = (acc_ref[...] + b2_ref[...]).astype(o_ref.dtype)


# ---------------------------------------------------------------------------
# Host-side wrappers
# ---------------------------------------------------------------------------

class PreparedParams(NamedTuple):
    w1: jax.Array   # (d_in_p, hid_p)  compute dtype
    b1: jax.Array   # (1, hid_p)       f32
    w2: jax.Array   # (hid_p, proj_p)  compute dtype
    b2: jax.Array   # (1, proj_p)      f32
    d_in: int
    hidden: int
    proj: int


def prepare_params(w1, b1, w2, b2, compute_dtype=None):
    """Pad / cast weights once (hoisted out of the per-call path).

    Weights are stored (in, out) so the kernel computes x @ W directly.
    """
    d_in, hidden = w1.shape
    proj = w2.shape[1]
    if compute_dtype is None:
        # bf16 compute (f32 accumulation) doubles MXU rate and halves the
        # weight / activation HBM + VMEM traffic on v5e/v6e/v7x.
        compute_dtype = jnp.bfloat16 if w1.dtype == jnp.float32 else w1.dtype
    d_in_p = _round_up(d_in, LANE)
    hid_p = _round_up(hidden, LANE)
    proj_p = _round_up(proj, LANE)
    w1p = jnp.pad(w1.astype(compute_dtype),
                  ((0, d_in_p - d_in), (0, hid_p - hidden)))
    w2p = jnp.pad(w2.astype(compute_dtype),
                  ((0, hid_p - hidden), (0, proj_p - proj)))
    b1p = jnp.pad(b1.astype(jnp.float32), (0, hid_p - hidden)).reshape(1, hid_p)
    b2p = jnp.pad(b2.astype(jnp.float32), (0, proj_p - proj)).reshape(1, proj_p)
    return PreparedParams(w1p, b1p, w2p, b2p, d_in, hidden, proj)


def apply_projection(x, params, *, tile_rows=None, hidden_block=None):
    """Apply Linear(D_in, 2P) -> ReLU -> Linear(2P, P) on the last axis of x."""
    *lead, d_in = x.shape
    if d_in != params.d_in:
        raise ValueError(f"last dim of x ({d_in}) != input_dims ({params.d_in})")

    w1p, b1p, w2p, b2p = params.w1, params.b1, params.w2, params.b2
    d_in_p, hid_p = w1p.shape
    proj_p = w2p.shape[1]
    proj = params.proj
    out_dtype = x.dtype
    cdt = w1p.dtype
    itm = jnp.dtype(cdt).itemsize
    out_itm = jnp.dtype(out_dtype).itemsize

    rows = 1
    for d in lead:
        rows *= d
    rows = max(rows, 1)

    capacity = _vmem_capacity_bytes()
    budget = int(capacity * 0.75)            # headroom for compiler scratch

    # Resident weight footprint assuming single-buffered weights (Buffered(1)).
    w_bytes = (d_in_p * hid_p + hid_p * proj_p) * itm + (hid_p + proj_p) * 4

    def resident_bytes(t, wmult=1):
        return (2 * t * (d_in_p * itm + proj_p * out_itm)   # 2x-buffered x / out
                + t * hid_p * 4 + t * proj_p * 4            # f32 h / y intermediates
                + wmult * w_bytes)

    def blocked_bytes(t, tk):
        return (2 * t * (d_in_p * itm + proj_p * out_itm)
                + t * tk * 4 + t * proj_p * 4               # f32 h block + acc scratch
                + 2 * (d_in_p * tk + tk * proj_p) * itm     # 2x-buffered weight blocks
                + 2 * tk * 4 + 2 * proj_p * 4)

    # Row tile: balanced so padding waste is < SUBLANE rows per tile; capped at
    # 1024 rows (per-grid-step overhead is already well amortized by then).
    if tile_rows is None:
        cap_rows = 1024
        n_tiles = max(1, _cdiv(rows, cap_rows))
        tile_rows = _round_up(_cdiv(rows, n_tiles), SUBLANE)
    tile_rows = max(SUBLANE, _round_up(tile_rows, SUBLANE))
    min_tile = min(MXU_M, tile_rows)

    # Choose path: keep weights resident if they (plus streaming tiles) fit,
    # otherwise stream the hidden dim rather than starving the MXU.
    use_blocked = hidden_block is not None
    if not use_blocked:
        while tile_rows > min_tile and resident_bytes(tile_rows) > budget:
            tile_rows = max(min_tile, _round_up(tile_rows // 2, SUBLANE))
        if resident_bytes(tile_rows) > budget:
            use_blocked = True

    rows_p = _round_up(rows, tile_rows)
    n_row_tiles = rows_p // tile_rows
    # Megacore sharding only pays off with >= 2 tiles per TensorCore.
    row_sem = "parallel" if n_row_tiles >= 4 else "arbitrary"

    # Pad / cast x (skipped when already aligned).
    x2 = x.reshape(rows, d_in)
    if x2.dtype != cdt:
        x2 = x2.astype(cdt)
    if rows_p != rows or d_in_p != d_in:
        x2 = jnp.pad(x2, ((0, rows_p - rows), (0, d_in_p - d_in)))

    def _limit(footprint):
        return min(capacity - (2 << 20),
                   max(int(footprint * 1.25) + (2 << 20), 32 << 20))

    if not use_blocked:
        flops = 2 * rows_p * (d_in_p * hid_p + hid_p * proj_p)
        bytes_accessed = (rows_p * d_in_p * itm + w_bytes
                          + rows_p * proj_p * out_itm)

        def _run_resident(single_buffer_weights):
            wmode = ({"pipeline_mode": pl.Buffered(1)}
                     if single_buffer_weights else {})
            footprint = resident_bytes(tile_rows,
                                       1 if single_buffer_weights else 2)
            return pl.pallas_call(
                _mlp_kernel_resident,
                out_shape=jax.ShapeDtypeStruct((rows_p, proj_p), out_dtype),
                grid=(n_row_tiles,),
                in_specs=[
                    pl.BlockSpec((tile_rows, d_in_p), lambda i: (i, 0)),        # x streamed
                    pl.BlockSpec((d_in_p, hid_p), lambda i: (0, 0), **wmode),   # W1 resident
                    pl.BlockSpec((1, hid_p), lambda i: (0, 0), **wmode),        # b1 resident
                    pl.BlockSpec((hid_p, proj_p), lambda i: (0, 0), **wmode),   # W2 resident
                    pl.BlockSpec((1, proj_p), lambda i: (0, 0), **wmode),       # b2 resident
                ],
                out_specs=pl.BlockSpec((tile_rows, proj_p), lambda i: (i, 0)),
                compiler_params=pltpu.CompilerParams(
                    dimension_semantics=(row_sem,),
                    vmem_limit_bytes=_limit(footprint)),
                cost_estimate=pl.CostEstimate(
                    flops=flops, transcendentals=0,
                    bytes_accessed=bytes_accessed),
            )(x2, w1p, b1p, w2p, b2p)

        try:
            out = _run_resident(True)
        except Exception:
            # pipeline_mode=Buffered(1) not supported in this build; the only
            # cost of the fallback is 2x VMEM on the resident weights.
            out = _run_resident(False)
    else:
        if hidden_block is None:
            hidden_block = hid_p
            while (hidden_block > LANE
                   and blocked_bytes(tile_rows, hidden_block) > budget):
                hidden_block = max(LANE, _round_up(hidden_block // 2, LANE))
        hidden_block = max(LANE, _round_up(min(hidden_block, hid_p), LANE))

        n_k = _cdiv(hid_p, hidden_block)
        hid_pp = n_k * hidden_block
        if hid_pp != hid_p:     # rare: extra zero-pad so hidden blocks tile evenly
            w1p = jnp.pad(w1p, ((0, 0), (0, hid_pp - hid_p)))
            b1p = jnp.pad(b1p, ((0, 0), (0, hid_pp - hid_p)))
            w2p = jnp.pad(w2p, ((0, hid_pp - hid_p), (0, 0)))

        flops = 2 * rows_p * (d_in_p * hid_pp + hid_pp * proj_p)
        bytes_accessed = (rows_p * d_in_p * itm
                          + n_row_tiles * (d_in_p * hid_pp + hid_pp * proj_p) * itm
                          + rows_p * proj_p * out_itm)
        footprint = blocked_bytes(tile_rows, hidden_block)

        out = pl.pallas_call(
            _mlp_kernel_hblocked,
            out_shape=jax.ShapeDtypeStruct((rows_p, proj_p), out_dtype),
            grid=(n_row_tiles, n_k),
            in_specs=[
                pl.BlockSpec((tile_rows, d_in_p), lambda i, k: (i, 0)),       # x per row tile
                pl.BlockSpec((d_in_p, hidden_block), lambda i, k: (0, k)),    # W1 column block
                pl.BlockSpec((1, hidden_block), lambda i, k: (0, k)),         # b1 block
                pl.BlockSpec((hidden_block, proj_p), lambda i, k: (k, 0)),    # W2 row block
                pl.BlockSpec((1, proj_p), lambda i, k: (0, 0)),               # b2
            ],
            out_specs=pl.BlockSpec((tile_rows, proj_p), lambda i, k: (i, 0)),
            scratch_shapes=[pltpu.VMEM((tile_rows, proj_p), jnp.float32)],
            compiler_params=pltpu.CompilerParams(
                dimension_semantics=(row_sem, "arbitrary"),
                vmem_limit_bytes=_limit(footprint)),
            cost_estimate=pl.CostEstimate(
                flops=flops, transcendentals=0,
                bytes_accessed=bytes_accessed),
        )(x2, w1p, b1p, w2p, b2p)

    out = out[:rows, :proj]
    return out.reshape(*lead, proj) if lead else out.reshape(proj)


def projection_layer(x, w1, b1, w2, b2, *, compute_dtype=None, tile_rows=None,
                     hidden_block=None):
    """One-shot convenience wrapper. For repeated calls, prefer
    prepare_params() once + apply_projection() (avoids re-padding weights)."""
    params = prepare_params(w1, b1, w2, b2, compute_dtype)
    return apply_projection(x, params, tile_rows=tile_rows,
                            hidden_block=hidden_block)


def init_params(key, input_dims, proj_dims, dtype=jnp.float32):
    """Deterministic synthetic init (uniform, like torch's default scale)."""
    k1, k2, k3, k4 = jax.random.split(key, 4)
    hidden = 2 * proj_dims
    bound1 = 1.0 / jnp.sqrt(input_dims)
    bound2 = 1.0 / jnp.sqrt(hidden)
    # Stored as (in, out) so the kernel computes x @ W directly.
    w1 = jax.random.uniform(k1, (input_dims, hidden), dtype, -bound1, bound1)
    b1 = jax.random.uniform(k2, (hidden,), dtype, -bound1, bound1)
    w2 = jax.random.uniform(k3, (hidden, proj_dims), dtype, -bound2, bound2)
    b2 = jax.random.uniform(k4, (proj_dims,), dtype, -bound2, bound2)
    return w1, b1, w2, b2


if __name__ == "__main__":
    key = jax.random.PRNGKey(0)
    kx, kp, kx2, kp2 = jax.random.split(key, 4)

    # --- Case 1: default path (bf16 compute, resident weights) -------------
    input_dims, proj_dims = 32, 16
    batch, seq = 2, 8
    x = jax.random.normal(kx, (batch, seq, input_dims), jnp.float32)
    w1, b1, w2, b2 = init_params(kp, input_dims, proj_dims)
    ref = jnp.maximum(x @ w1 + b1, 0.0) @ w2 + b2

    params_bf16 = prepare_params(w1, b1, w2, b2)            # hoisted pad/cast
    out = jax.block_until_ready(apply_projection(x, params_bf16))
    assert out.shape == (batch, seq, proj_dims)
    assert jnp.allclose(out, ref, atol=5e-2, rtol=5e-2)      # bf16 inputs, f32 acc

    params_f32 = prepare_params(w1, b1, w2, b2, compute_dtype=jnp.float32)
    out32 = jax.block_until_ready(apply_projection(x, params_f32))
    assert jnp.allclose(out32, ref, atol=1e-4, rtol=1e-4)

    # --- Case 2: exercise the hidden-dim-blocked (accumulator) path --------
    input_dims2, proj_dims2 = 32, 128       # hidden = 256 -> two 128-wide blocks
    x_b = jax.random.normal(kx2, (batch, seq, input_dims2), jnp.float32)
    w1b, b1b, w2b, b2b = init_params(kp2, input_dims2, proj_dims2)
    params_b = prepare_params(w1b, b1b, w2b, b2b, compute_dtype=jnp.float32)
    out_b = jax.block_until_ready(
        apply_projection(x_b, params_b, hidden_block=128))
    ref_b = jnp.maximum(x_b @ w1b + b1b, 0.0) @ w2b + b2b
    assert out_b.shape == (batch, seq, proj_dims2)
    assert jnp.allclose(out_b, ref_b, atol=1e-4, rtol=1e-4)

    print("KERNEL_OK")
</pallas_src>

<mosaic_0001>
module attributes {stable_mosaic.version = 11 : i64} {
  func.func @_mlp_kernel_resident(%arg0: i32, %arg1: memref<16x128xbf16, #tpu.memory_space<vmem>>, %arg2: memref<128x128xbf16, #tpu.memory_space<vmem>>, %arg3: memref<1x128xf32, #tpu.memory_space<vmem>>, %arg4: memref<128x128xbf16, #tpu.memory_space<vmem>>, %arg5: memref<1x128xf32, #tpu.memory_space<vmem>>, %arg6: memref<16x128xf32, #tpu.memory_space<vmem>>) attributes {dimension_semantics = [#tpu.dimension_semantics<arbitrary>], iteration_bounds = array<i64: 1>, scalar_prefetch = 0 : i64, scratch_operands = 0 : i64, tpu.core_type = #tpu.core_type<tc>, window_params = [{transform_indices = @transform_0, window_bounds = array<i64: 16, 128>}, {pipeline_mode = #tpu.pipeline_mode<synchronous>, transform_indices = @transform_1, window_bounds = array<i64: 128, 128>}, {pipeline_mode = #tpu.pipeline_mode<synchronous>, transform_indices = @transform_2, window_bounds = array<i64: 1, 128>}, {pipeline_mode = #tpu.pipeline_mode<synchronous>, transform_indices = @transform_3, window_bounds = array<i64: 128, 128>}, {pipeline_mode = #tpu.pipeline_mode<synchronous>, transform_indices = @transform_4, window_bounds = array<i64: 1, 128>}, {transform_indices = @transform_5, window_bounds = array<i64: 16, 128>}]} {
    %c0 = arith.constant 0 : index
    %c0_0 = arith.constant 0 : index
    %0 = vector.load %arg1[%c0, %c0_0] : memref<16x128xbf16, #tpu.memory_space<vmem>>, vector<16x128xbf16>
    %c0_1 = arith.constant 0 : index
    %c0_2 = arith.constant 0 : index
    %1 = vector.load %arg2[%c0_1, %c0_2] : memref<128x128xbf16, #tpu.memory_space<vmem>>, vector<128x128xbf16>
    %cst = arith.constant dense<0.000000e+00> : vector<16x128xf32>
    %2 = tpu.matmul %0, %1, %cst {dimension_numbers = #tpu.dot_dimension_numbers<[1], [0], [0], [1], [0, 0, 1, 1], [], []>} : vector<16x128xbf16>, vector<128x128xbf16>, vector<16x128xf32> -> vector<16x128xf32>
    %c0_3 = arith.constant 0 : index
    %c0_4 = arith.constant 0 : index
    %3 = vector.load %arg3[%c0_3, %c0_4] : memref<1x128xf32, #tpu.memory_space<vmem>>, vector<1x128xf32>
    %4 = vector.broadcast %3 : vector<1x128xf32> to vector<16x128xf32>
    %5 = arith.addf %2, %4 : vector<16x128xf32>
    %cst_5 = arith.constant 0.000000e+00 : f32
    %6 = vector.broadcast %cst_5 : f32 to vector<16x128xf32>
    %7 = arith.maximumf %5, %6 : vector<16x128xf32>
    %8 = arith.truncf %7 : vector<16x128xf32> to vector<16x128xbf16>
    %c0_6 = arith.constant 0 : index
    %c0_7 = arith.constant 0 : index
    %9 = vector.load %arg4[%c0_6, %c0_7] : memref<128x128xbf16, #tpu.memory_space<vmem>>, vector<128x128xbf16>
    %cst_8 = arith.constant dense<0.000000e+00> : vector<16x128xf32>
    %10 = tpu.matmul %8, %9, %cst_8 {dimension_numbers = #tpu.dot_dimension_numbers<[1], [0], [0], [1], [0, 0, 1, 1], [], []>} : vector<16x128xbf16>, vector<128x128xbf16>, vector<16x128xf32> -> vector<16x128xf32>
    %c0_9 = arith.constant 0 : index
    %c0_10 = arith.constant 0 : index
    %11 = vector.load %arg5[%c0_9, %c0_10] : memref<1x128xf32, #tpu.memory_space<vmem>>, vector<1x128xf32>
    %12 = vector.broadcast %11 : vector<1x128xf32> to vector<16x128xf32>
    %13 = arith.addf %10, %12 : vector<16x128xf32>
    %c0_11 = arith.constant 0 : index
    %c0_12 = arith.constant 0 : index
    %14 = vector.load %arg6[%c0_11, %c0_12] : memref<16x128xf32, #tpu.memory_space<vmem>>, vector<16x128xf32>
    tpu.vector_store %arg6[%c0_11, %c0_12], %13 {strides = array<i32>} : memref<16x128xf32, #tpu.memory_space<vmem>>, vector<16x128xf32>,
    return
  }
  func.func @transform_0(%arg0: i32) -> (i32, i32) {
    %c0_i32 = arith.constant 0 : i32
    %c0_i32_0 = arith.constant 0 : i32
    return %arg0, %c0_i32 : i32, i32
  }
  func.func @transform_1(%arg0: i32) -> (i32, i32) {
    %c0_i32 = arith.constant 0 : i32
    %c0_i32_0 = arith.constant 0 : i32
    %c0_i32_1 = arith.constant 0 : i32
    return %c0_i32, %c0_i32_0 : i32, i32
  }
  func.func @transform_2(%arg0: i32) -> (i32, i32) {
    %c0_i32 = arith.constant 0 : i32
    %c0_i32_0 = arith.constant 0 : i32
    %c0_i32_1 = arith.constant 0 : i32
    return %c0_i32, %c0_i32_0 : i32, i32
  }
  func.func @transform_3(%arg0: i32) -> (i32, i32) {
    %c0_i32 = arith.constant 0 : i32
    %c0_i32_0 = arith.constant 0 : i32
    %c0_i32_1 = arith.constant 0 : i32
    return %c0_i32, %c0_i32_0 : i32, i32
  }
  func.func @transform_4(%arg0: i32) -> (i32, i32) {
    %c0_i32 = arith.constant 0 : i32
    %c0_i32_0 = arith.constant 0 : i32
    %c0_i32_1 = arith.constant 0 : i32
    return %c0_i32, %c0_i32_0 : i32, i32
  }
  func.func @transform_5(%arg0: i32) -> (i32, i32) {
    %c0_i32 = arith.constant 0 : i32
    %c0_i32_0 = arith.constant 0 : i32
    return %arg0, %c0_i32 : i32, i32
  }
}

module attributes {stable_mosaic.version = 11 : i64} {
  func.func @_mlp_kernel_resident(%arg0: i32, %arg1: memref<16x128xbf16, #tpu.memory_space<vmem>>, %arg2: memref<128x128xbf16, #tpu.memory_space<vmem>>, %arg3: memref<1x128xf32, #tpu.memory_space<vmem>>, %arg4: memref<128x128xbf16, #tpu.memory_space<vmem>>, %arg5: memref<1x128xf32, #tpu.memory_space<vmem>>, %arg6: memref<16x128xf32, #tpu.memory_space<vmem>>) attributes {dimension_semantics = [#tpu.dimension_semantics<arbitrary>], iteration_bounds = array<i64: 1>, scalar_prefetch = 0 : i64, scratch_operands = 0 : i64, tpu.core_type = #tpu.core_type<tc>, window_params = [{transform_indices = @transform_0, window_bounds = array<i64: 16, 128>}, {pipeline_mode = #tpu.pipeline_mode<synchronous>, transform_indices = @transform_1, window_bounds = array<i64: 128, 128>}, {pipeline_mode = #tpu.pipeline_mode<synchronous>, transform_indices = @transform_2, window_bounds = array<i64: 1, 128>}, {pipeline_mode = #tpu.pipeline_mode<synchronous>, transform_indices = @transform_3, window_bounds = array<i64: 128, 128>}, {pipeline_mode = #tpu.pipeline_mode<synchronous>, transform_indices = @transform_4, window_bounds = array<i64: 1, 128>}, {transform_indices = @transform_5, window_bounds = array<i64: 16, 128>}]} {
    %c0 = arith.constant 0 : index
    %c0_0 = arith.constant 0 : index
    %0 = vector.load %arg1[%c0, %c0_0] : memref<16x128xbf16, #tpu.memory_space<vmem>>, vector<16x128xbf16>
    %c0_1 = arith.constant 0 : index
    %c0_2 = arith.constant 0 : index
    %1 = vector.load %arg2[%c0_1, %c0_2] : memref<128x128xbf16, #tpu.memory_space<vmem>>, vector<128x128xbf16>
    %cst = arith.constant dense<0.000000e+00> : vector<16x128xf32>
    %2 = tpu.matmul %0, %1, %cst {dimension_numbers = #tpu.dot_dimension_numbers<[1], [0], [0], [1], [0, 0, 1, 1], [], []>} : vector<16x128xbf16>, vector<128x128xbf16>, vector<16x128xf32> -> vector<16x128xf32>
    %c0_3 = arith.constant 0 : index
    %c0_4 = arith.constant 0 : index
    %3 = vector.load %arg3[%c0_3, %c0_4] : memref<1x128xf32, #tpu.memory_space<vmem>>, vector<1x128xf32>
    %4 = vector.broadcast %3 : vector<1x128xf32> to vector<16x128xf32>
    %5 = arith.addf %2, %4 : vector<16x128xf32>
    %cst_5 = arith.constant 0.000000e+00 : f32
    %6 = vector.broadcast %cst_5 : f32 to vector<16x128xf32>
    %7 = arith.maximumf %5, %6 : vector<16x128xf32>
    %8 = arith.truncf %7 : vector<16x128xf32> to vector<16x128xbf16>
    %c0_6 = arith.constant 0 : index
    %c0_7 = arith.constant 0 : index
    %9 = vector.load %arg4[%c0_6, %c0_7] : memref<128x128xbf16, #tpu.memory_space<vmem>>, vector<128x128xbf16>
    %cst_8 = arith.constant dense<0.000000e+00> : vector<16x128xf32>
    %10 = tpu.matmul %8, %9, %cst_8 {dimension_numbers = #tpu.dot_dimension_numbers<[1], [0], [0], [1], [0, 0, 1, 1], [], []>} : vector<16x128xbf16>, vector<128x128xbf16>, vector<16x128xf32> -> vector<16x128xf32>
    %c0_9 = arith.constant 0 : index
    %c0_10 = arith.constant 0 : index
    %11 = vector.load %arg5[%c0_9, %c0_10] : memref<1x128xf32, #tpu.memory_space<vmem>>, vector<1x128xf32>
    %12 = vector.broadcast %11 : vector<1x128xf32> to vector<16x128xf32>
    %13 = arith.addf %10, %12 : vector<16x128xf32>
    %c0_11 = arith.constant 0 : index
    %c0_12 = arith.constant 0 : index
    %14 = vector.load %arg6[%c0_11, %c0_12] : memref<16x128xf32, #tpu.memory_space<vmem>>, vector<16x128xf32>
    tpu.vector_store %arg6[%c0_11, %c0_12], %13 {strides = array<i32>} : memref<16x128xf32, #tpu.memory_space<vmem>>, vector<16x128xf32>,
    return
  }
  func.func @transform_0(%arg0: i32) -> (i32, i32) {
    %c0_i32 = arith.constant 0 : i32
    %c0_i32_0 = arith.constant 0 : i32
    return %arg0, %c0_i32 : i32, i32
  }
  func.func @transform_1(%arg0: i32) -> (i32, i32) {
    %c0_i32 = arith.constant 0 : i32
    %c0_i32_0 = arith.constant 0 : i32
    %c0_i32_1 = arith.constant 0 : i32
    return %c0_i32, %c0_i32_0 : i32, i32
  }
  func.func @transform_2(%arg0: i32) -> (i32, i32) {
    %c0_i32 = arith.constant 0 : i32
    %c0_i32_0 = arith.constant 0 : i32
    %c0_i32_1 = arith.constant 0 : i32
    return %c0_i32, %c0_i32_0 : i32, i32
  }
  func.func @transform_3(%arg0: i32) -> (i32, i32) {
    %c0_i32 = arith.constant 0 : i32
    %c0_i32_0 = arith.constant 0 : i32
    %c0_i32_1 = arith.constant 0 : i32
    return %c0_i32, %c0_i32_0 : i32, i32
  }
  func.func @transform_4(%arg0: i32) -> (i32, i32) {
    %c0_i32 = arith.constant 0 : i32
    %c0_i32_0 = arith.constant 0 : i32
    %c0_i32_1 = arith.constant 0 : i32
    return %c0_i32, %c0_i32_0 : i32, i32
  }
  func.func @transform_5(%arg0: i32) -> (i32, i32) {
    %c0_i32 = arith.constant 0 : i32
    %c0_i32_0 = arith.constant 0 : i32
    return %arg0, %c0_i32 : i32, i32
  }
}

</mosaic_0001>

<llo_original>
// kernel: tpu_custom_call.1
$region0: #{tpu_custom_call.1}
  #allocation0 [shape = 'u32[]', space=smem, size = 0x4, offset = 0x4, fixed_abs, tag = 'smem constant byte address 0x4 - core index']
  #allocation1 [shape = 'u32[72,128]{1,0:T(1,128)}', space=vmem, size = 0x9000, scoped, tag = 'internal scratch']
  %s0 = inlined_call_operand.hbm [shape: bf16[16,128], index: 0, kind: input, shape index: {}]
  %s1 = inlined_call_operand.hbm [shape: bf16[128,128], index: 1, kind: input, shape index: {}]
  %s2 = inlined_call_operand.vmem [shape: f32[1,128], index: 2, kind: input, shape index: {}]
  %s3 = inlined_call_operand.hbm [shape: bf16[128,128], index: 3, kind: input, shape index: {}]
  %s4 = inlined_call_operand.vmem [shape: f32[1,128], index: 4, kind: input, shape index: {}]
  %s5 = inlined_call_operand.hbm [shape: f32[16,128], index: 5, kind: output, shape index: {}]
  %s6 = sld [smem:[#allocation0]]
  $region42: #{tpu_custom_call.1} parent=0
    _
  %s8 = ssub.s32 1, %s6
  %s9 = scalar_select 0, %s8, %s6
  $region1: #{tpu_custom_call.1} parent=0
    #allocation2 [shape = 'u8[4096]{0}', space=vmem, size = 0x1000, scoped, tag = 'input window, operand 0, single buffered']
    #allocation3 [shape = 's32[1]{0}', space=sflag, size = 0x4, scoped, tag = 'scoped memory for tpu_custom_call.1']
    #allocation4 [shape = 's32[1]{0}', space=sflag, size = 0x4, scoped, tag = 'scoped memory for tpu_custom_call.1']
    #allocation5 [shape = 'u8[32768]{0}', space=vmem, size = 0x8000, scoped, tag = 'input window, operand 1, single buffered']
    #allocation6 [shape = 's32[1]{0}', space=sflag, size = 0x4, scoped, tag = 'scoped memory for tpu_custom_call.1']
    #allocation7 [shape = 'u8[32768]{0}', space=vmem, size = 0x8000, scoped, tag = 'input window, operand 3, single buffered']
    #allocation8 [shape = 'u8[8192]{0}', space=vmem, size = 0x2000, scoped, tag = 'output window, operand 0, single buffered']
    %10 = vsyncpa [#allocation3], 0
    %11 = vsyncpa [#allocation6], 0
    %12 = vsyncpa [#allocation4], 0
    // Predicated region
    $region2: #{tpu_custom_call.1} parent=1 // pred_check
      _
    $region3: #{tpu_custom_call.1} parent=1 // pred_check_branch
      %14 = sbr.rel (0) target = $region5
    $region4: #{tpu_custom_call.1} parent=1 // pred_region
      %16 = vsyncadd [#allocation3], 0
      %s17 = sshll.u32 %s0, 4
      %s18 = int_to_ptr.hbm [resolvable:$true] %s17
      %s19 = sshll.u32 [#allocation2], 4
      %s20 = int_to_ptr.vmem [resolvable:$true] %s19
      %25 = dma.hbm_to_vmem [thread:$0]  %s18, 128, %s20, [#allocation3], 64, 64, 4
    $region5: #{tpu_custom_call.1} parent=1 // pred_fallthru
      _
    // Predicated region
    $region6: #{tpu_custom_call.1} parent=1 // pred_check
      _
    $region7: #{tpu_custom_call.1} parent=1 // pred_check_branch
      %27 = sbr.rel (0) target = $region9
    $region8: #{tpu_custom_call.1} parent=1 // pred_region
      %29 = vsyncadd [#allocation6], 0
      %s30 = sshll.u32 %s1, 4
      %s31 = int_to_ptr.hbm [resolvable:$true] %s30
      %s32 = sshll.u32 [#allocation5], 4
      %s33 = int_to_ptr.vmem [resolvable:$true] %s32
      %38 = dma.hbm_to_vmem [thread:$0]  %s31, 1024, %s33, [#allocation6], 64, 64, 4
    $region9: #{tpu_custom_call.1} parent=1 // pred_fallthru
      _
    // Predicated region
    $region10: #{tpu_custom_call.1} parent=1 // pred_check
      _
    $region11: #{tpu_custom_call.1} parent=1 // pred_check_branch
      %40 = sbr.rel (0) target = $region13
    $region12: #{tpu_custom_call.1} parent=1 // pred_region
      _
    $region13: #{tpu_custom_call.1} parent=1 // pred_fallthru
      _
    // Predicated region
    $region14: #{tpu_custom_call.1} parent=1 // pred_check
      _
    $region15: #{tpu_custom_call.1} parent=1 // pred_check_branch
      %42 = sbr.rel (0) target = $region17
    $region16: #{tpu_custom_call.1} parent=1 // pred_region
      %44 = vsyncadd [#allocation6], 0
      %s45 = sshll.u32 %s3, 4
      %s46 = int_to_ptr.hbm [resolvable:$true] %s45
      %s47 = sshll.u32 [#allocation7], 4
      %s48 = int_to_ptr.vmem [resolvable:$true] %s47
      %53 = dma.hbm_to_vmem [thread:$0]  %s46, 1024, %s48, [#allocation6], 64, 64, 4
    $region17: #{tpu_custom_call.1} parent=1 // pred_fallthru
      _
    // Predicated region
    $region18: #{tpu_custom_call.1} parent=1 // pred_check
      _
    $region19: #{tpu_custom_call.1} parent=1 // pred_check_branch
      %55 = sbr.rel (0) target = $region21
    $region20: #{tpu_custom_call.1} parent=1 // pred_region
      _
    $region21: #{tpu_custom_call.1} parent=1 // pred_fallthru
      _
    // Predicated region
    $region22: #{tpu_custom_call.1} parent=1 // pred_check
      _
    $region23: #{tpu_custom_call.1} parent=1 // pred_check_branch
      %57 = sbr.rel (0) target = $region25
    $region24: #{tpu_custom_call.1} parent=1 // pred_region
      %59 = dma.done [#allocation3], 128
    $region25: #{tpu_custom_call.1} parent=1 // pred_fallthru
      _
    // Predicated region
    $region26: #{tpu_custom_call.1} parent=1 // pred_check
      _
    $region27: #{tpu_custom_call.1} parent=1 // pred_check_branch
      %61 = sbr.rel (0) target = $region29
    $region28: #{tpu_custom_call.1} parent=1 // pred_region
      %63 = dma.done [#allocation6], 1024
    $region29: #{tpu_custom_call.1} parent=1 // pred_fallthru
      _
    // Predicated region
    $region30: #{tpu_custom_call.1} parent=1 // pred_check
      _
    $region31: #{tpu_custom_call.1} parent=1 // pred_check_branch
      %65 = sbr.rel (0) target = $region33
    $region32: #{tpu_custom_call.1} parent=1 // pred_region
      %67 = dma.done [#allocation6], 1024
    $region33: #{tpu_custom_call.1} parent=1 // pred_fallthru
      _
    %v68 = vld [vmem:[#allocation2] sm:$0xf]
    %v69 = vld [vmem:[#allocation2 + $0x4] sm:$0xf]
    %v70 = vld [vmem:[#allocation5] sm:$0xf]
    %v71 = vld [vmem:[#allocation5 + $0x4] sm:$0xf]
    %v72 = vld [vmem:[#allocation5 + $0x8] sm:$0xf]
    %v73 = vld [vmem:[#allocation5 + $0xc] sm:$0xf]
    %v74 = vld [vmem:[#allocation5 + $0x10] sm:$0xf]
    %v75 = vld [vmem:[#allocation5 + $0x14] sm:$0xf]
    %v76 = vld [vmem:[#allocation5 + $0x18] sm:$0xf]
    %v77 = vld [vmem:[#allocation5 + $0x1c] sm:$0xf]
    %v78 = vld [vmem:[#allocation5 + $0x20] sm:$0xf]
    %v79 = vld [vmem:[#allocation5 + $0x24] sm:$0xf]
    %v80 = vld [vmem:[#allocation5 + $0x28] sm:$0xf]
    %v81 = vld [vmem:[#allocation5 + $0x2c] sm:$0xf]
    %v82 = vld [vmem:[#allocation5 + $0x30] sm:$0xf]
    %v83 = vld [vmem:[#allocation5 + $0x34] sm:$0xf]
    %v84 = vld [vmem:[#allocation5 + $0x38] sm:$0xf]
    %v85 = vld [vmem:[#allocation5 + $0x3c] sm:$0xf]
    %v86 = vld [vmem:[%s2] sm:$0x1]
    %v88 = vperm.slane %v86, 0
    %v92 = vunpack.c.l.b16 %v68
    %v93 = vunpack.c.l.b16 %v69
    %v94 = vpack.c.b16 %v93, %v92
    %v112 = vunpack.c.l.b16 %v70
    %v113 = vunpack.c.l.b16 %v71
    %v114 = vunpack.c.l.b16 %v72
    %v115 = vunpack.c.l.b16 %v73
    %v116 = vunpack.c.l.b16 %v74
    %v117 = vunpack.c.l.b16 %v75
    %v118 = vunpack.c.l.b16 %v76
    %v119 = vunpack.c.l.b16 %v77
    %v120 = vunpack.c.l.b16 %v78
    %v121 = vunpack.c.l.b16 %v79
    %v122 = vunpack.c.l.b16 %v80
    %v123 = vunpack.c.l.b16 %v81
    %v124 = vunpack.c.l.b16 %v82
    %v125 = vunpack.c.l.b16 %v83
    %v126 = vunpack.c.l.b16 %v84
    %v127 = vunpack.c.l.b16 %v85
    %v128 = vpack.c.b16 %v113, %v112
    %v129 = vpack.c.b16 %v115, %v114
    %v130 = vpack.c.b16 %v117, %v116
    %v131 = vpack.c.b16 %v119, %v118
    %v132 = vpack.c.b16 %v121, %v120
    %v133 = vpack.c.b16 %v123, %v122
    %v134 = vpack.c.b16 %v125, %v124
    %v135 = vpack.c.b16 %v127, %v126
    %144 = vmatpush.bf16.msra.mxu0 %v135
    %145 = vmatpush.bf16.msra.mxu0 %v134
    %146 = vmatpush.bf16.msra.mxu0 %v133
    %147 = vmatpush.bf16.msra.mxu0 %v132
    %148 = vmatpush.bf16.msra.mxu0 %v131
    %149 = vmatpush.bf16.msra.mxu0 %v130
    %150 = vmatpush.bf16.msra.mxu0 %v129
    %151 = vmatpush.bf16.msra.mxu0 %v128
    %152 = vmatmul.bf16.gmra.mxu0 %v94
    %v153 = vpop.f32.mrf.mxu0
    %v154 = vadd.f32 %v88, %v153
    %v155 = vpop.f32.mrf.mxu0
    %v156 = vadd.f32 %v88, %v155
    %157 = vdwg.mxu0
    %v158 = vmax.f32 %v154, 0.0
    %v159 = vmax.f32 %v156, 0.0
    %v160 = vpack.c.bf16 %v159, %v158
    %v161 = vld [vmem:[#allocation7] sm:$0xf]
    %v162 = vld [vmem:[#allocation7 + $0x4] sm:$0xf]
    %v163 = vld [vmem:[#allocation7 + $0x8] sm:$0xf]
    %v164 = vld [vmem:[#allocation7 + $0xc] sm:$0xf]
    %v165 = vld [vmem:[#allocation7 + $0x10] sm:$0xf]
    %v166 = vld [vmem:[#allocation7 + $0x14] sm:$0xf]
    %v167 = vld [vmem:[#allocation7 + $0x18] sm:$0xf]
    %v168 = vld [vmem:[#allocation7 + $0x1c] sm:$0xf]
    %v169 = vld [vmem:[#allocation7 + $0x20] sm:$0xf]
    %v170 = vld [vmem:[#allocation7 + $0x24] sm:$0xf]
    %v171 = vld [vmem:[#allocation7 + $0x28] sm:$0xf]
    %v172 = vld [vmem:[#allocation7 + $0x2c] sm:$0xf]
    %v173 = vld [vmem:[#allocation7 + $0x30] sm:$0xf]
    %v174 = vld [vmem:[#allocation7 + $0x34] sm:$0xf]
    %v175 = vld [vmem:[#allocation7 + $0x38] sm:$0xf]
    %v176 = vld [vmem:[#allocation7 + $0x3c] sm:$0xf]
    %v177 = vld [vmem:[%s4] sm:$0x1]
    %v179 = vperm.slane %v177, 0
    %v197 = vunpack.c.l.b16 %v161
    %v198 = vunpack.c.l.b16 %v162
    %v199 = vunpack.c.l.b16 %v163
    %v200 = vunpack.c.l.b16 %v164
    %v201 = vunpack.c.l.b16 %v165
    %v202 = vunpack.c.l.b16 %v166
    %v203 = vunpack.c.l.b16 %v167
    %v204 = vunpack.c.l.b16 %v168
    %v205 = vunpack.c.l.b16 %v169
    %v206 = vunpack.c.l.b16 %v170
    %v207 = vunpack.c.l.b16 %v171
    %v208 = vunpack.c.l.b16 %v172
    %v209 = vunpack.c.l.b16 %v173
    %v210 = vunpack.c.l.b16 %v174
    %v211 = vunpack.c.l.b16 %v175
    %v212 = vunpack.c.l.b16 %v176
    %v213 = vpack.c.b16 %v198, %v197
    %v214 = vpack.c.b16 %v200, %v199
    %v215 = vpack.c.b16 %v202, %v201
    %v216 = vpack.c.b16 %v204, %v203
    %v217 = vpack.c.b16 %v206, %v205
    %v218 = vpack.c.b16 %v208, %v207
    %v219 = vpack.c.b16 %v210, %v209
    %v220 = vpack.c.b16 %v212, %v211
    %229 = vmatpush.bf16.msra.mxu0 %v220
    %230 = vmatpush.bf16.msra.mxu0 %v219
    %231 = vmatpush.bf16.msra.mxu0 %v218
    %232 = vmatpush.bf16.msra.mxu0 %v217
    %233 = vmatpush.bf16.msra.mxu0 %v216
    %234 = vmatpush.bf16.msra.mxu0 %v215
    %235 = vmatpush.bf16.msra.mxu0 %v214
    %236 = vmatpush.bf16.msra.mxu0 %v213
    %237 = vmatmul.bf16.gmra.mxu0 %v160
    %v238 = vpop.f32.mrf.mxu0
    %v239 = vadd.f32 %v179, %v238
    %v240 = vpop.f32.mrf.mxu0
    %v241 = vadd.f32 %v179, %v240
    %242 = vdwg.mxu0
    %243 = vst [vmem:[#allocation8] sm:$0xff] %v239
    %244 = vst [vmem:[#allocation8 + $0x8] sm:$0xff] %v241
    // Predicated region
    $region34: #{tpu_custom_call.1} parent=1 // pred_check
      _
    $region35: #{tpu_custom_call.1} parent=1 // pred_check_branch
      %246 = sbr.rel (0) target = $region37
    $region36: #{tpu_custom_call.1} parent=1 // pred_region
      %248 = vsyncadd [#allocation4], 0
      %s249 = sshll.u32 [#allocation8], 4
      %s250 = int_to_ptr.vmem [resolvable:$true] %s249
      %s251 = sshll.u32 %s5, 4
      %s252 = int_to_ptr.hbm [resolvable:$true] %s251
      %257 = dma.vmem_to_hbm [thread:$0]  %s250, 256, %s252, [#allocation4], 128, 128, 8
    $region37: #{tpu_custom_call.1} parent=1 // pred_fallthru
      _
    // Predicated region
    $region38: #{tpu_custom_call.1} parent=1 // pred_check
      _
    $region39: #{tpu_custom_call.1} parent=1 // pred_check_branch
      %259 = sbr.rel (0) target = $region41
    $region40: #{tpu_custom_call.1} parent=1 // pred_region
      %261 = dma.done [#allocation4], 256
    $region41: #{tpu_custom_call.1} parent=1 // pred_fallthru
      _
    %262 = vsyncpa [#allocation3], 1
    %263 = vsyncpa [#allocation6], 1
    %264 = vsyncpa [#allocation4], 1

// kernel: tpu_custom_call.1
$region0: #{tpu_custom_call.1}
  #allocation0 [shape = 'u32[]', space=smem, size = 0x4, offset = 0x4, fixed_abs, tag = 'smem constant byte address 0x4 - core index']
  #allocation1 [shape = 'u32[72,128]{1,0:T(1,128)}', space=vmem, size = 0x9000, scoped, tag = 'internal scratch']
  %s0 = inlined_call_operand.hbm [shape: bf16[16,128], index: 0, kind: input, shape index: {}]
  %s1 = inlined_call_operand.hbm [shape: bf16[128,128], index: 1, kind: input, shape index: {}]
  %s2 = inlined_call_operand.vmem [shape: f32[1,128], index: 2, kind: input, shape index: {}]
  %s3 = inlined_call_operand.hbm [shape: bf16[128,128], index: 3, kind: input, shape index: {}]
  %s4 = inlined_call_operand.vmem [shape: f32[1,128], index: 4, kind: input, shape index: {}]
  %s5 = inlined_call_operand.hbm [shape: f32[16,128], index: 5, kind: output, shape index: {}]
  %s6 = sld [smem:[#allocation0]]
  $region42: #{tpu_custom_call.1} parent=0
    _
  %s8 = ssub.s32 1, %s6
  %s9 = scalar_select 0, %s8, %s6
  $region1: #{tpu_custom_call.1} parent=0
    #allocation2 [shape = 'u8[4096]{0}', space=vmem, size = 0x1000, scoped, tag = 'input window, operand 0, single buffered']
    #allocation3 [shape = 's32[1]{0}', space=sflag, size = 0x4, scoped, tag = 'scoped memory for tpu_custom_call.1']
    #allocation4 [shape = 's32[1]{0}', space=sflag, size = 0x4, scoped, tag = 'scoped memory for tpu_custom_call.1']
    #allocation5 [shape = 'u8[32768]{0}', space=vmem, size = 0x8000, scoped, tag = 'input window, operand 1, single buffered']
    #allocation6 [shape = 's32[1]{0}', space=sflag, size = 0x4, scoped, tag = 'scoped memory for tpu_custom_call.1']
    #allocation7 [shape = 'u8[32768]{0}', space=vmem, size = 0x8000, scoped, tag = 'input window, operand 3, single buffered']
    #allocation8 [shape = 'u8[8192]{0}', space=vmem, size = 0x2000, scoped, tag = 'output window, operand 0, single buffered']
    %10 = vsyncpa [#allocation3], 0
    %11 = vsyncpa [#allocation6], 0
    %12 = vsyncpa [#allocation4], 0
    // Predicated region
    $region2: #{tpu_custom_call.1} parent=1 // pred_check
      _
    $region3: #{tpu_custom_call.1} parent=1 // pred_check_branch
      %14 = sbr.rel (0) target = $region5
    $region4: #{tpu_custom_call.1} parent=1 // pred_region
      %16 = vsyncadd [#allocation3], 0
      %s17 = sshll.u32 %s0, 4
      %s18 = int_to_ptr.hbm [resolvable:$true] %s17
      %s19 = sshll.u32 [#allocation2], 4
      %s20 = int_to_ptr.vmem [resolvable:$true] %s19
      %25 = dma.hbm_to_vmem [thread:$0]  %s18, 128, %s20, [#allocation3], 64, 64, 4
    $region5: #{tpu_custom_call.1} parent=1 // pred_fallthru
      _
    // Predicated region
    $region6: #{tpu_custom_call.1} parent=1 // pred_check
      _
    $region7: #{tpu_custom_call.1} parent=1 // pred_check_branch
      %27 = sbr.rel (0) target = $region9
    $region8: #{tpu_custom_call.1} parent=1 // pred_region
      %29 = vsyncadd [#allocation6], 0
      %s30 = sshll.u32 %s1, 4
      %s31 = int_to_ptr.hbm [resolvable:$true] %s30
      %s32 = sshll.u32 [#allocation5], 4
      %s33 = int_to_ptr.vmem [resolvable:$true] %s32
      %38 = dma.hbm_to_vmem [thread:$0]  %s31, 1024, %s33, [#allocation6], 64, 64, 4
    $region9: #{tpu_custom_call.1} parent=1 // pred_fallthru
      _
    // Predicated region
    $region10: #{tpu_custom_call.1} parent=1 // pred_check
      _
    $region11: #{tpu_custom_call.1} parent=1 // pred_check_branch
      %40 = sbr.rel (0) target = $region13
    $region12: #{tpu_custom_call.1} parent=1 // pred_region
      _
    $region13: #{tpu_custom_call.1} parent=1 // pred_fallthru
      _
    // Predicated region
    $region14: #{tpu_custom_call.1} parent=1 // pred_check
      _
    $region15: #{tpu_custom_call.1} parent=1 // pred_check_branch
      %42 = sbr.rel (0) target = $region17
    $region16: #{tpu_custom_call.1} parent=1 // pred_region
      %44 = vsyncadd [#allocation6], 0
      %s45 = sshll.u32 %s3, 4
      %s46 = int_to_ptr.hbm [resolvable:$true] %s45
      %s47 = sshll.u32 [#allocation7], 4
      %s48 = int_to_ptr.vmem [resolvable:$true] %s47
      %53 = dma.hbm_to_vmem [thread:$0]  %s46, 1024, %s48, [#allocation6], 64, 64, 4
    $region17: #{tpu_custom_call.1} parent=1 // pred_fallthru
      _
    // Predicated region
    $region18: #{tpu_custom_call.1} parent=1 // pred_check
      _
    $region19: #{tpu_custom_call.1} parent=1 // pred_check_branch
      %55 = sbr.rel (0) target = $region21
    $region20: #{tpu_custom_call.1} parent=1 // pred_region
      _
    $region21: #{tpu_custom_call.1} parent=1 // pred_fallthru
      _
    // Predicated region
    $region22: #{tpu_custom_call.1} parent=1 // pred_check
      _
    $region23: #{tpu_custom_call.1} parent=1 // pred_check_branch
      %57 = sbr.rel (0) target = $region25
    $region24: #{tpu_custom_call.1} parent=1 // pred_region
      %59 = dma.done [#allocation3], 128
    $region25: #{tpu_custom_call.1} parent=1 // pred_fallthru
      _
    // Predicated region
    $region26: #{tpu_custom_call.1} parent=1 // pred_check
      _
    $region27: #{tpu_custom_call.1} parent=1 // pred_check_branch
      %61 = sbr.rel (0) target = $region29
    $region28: #{tpu_custom_call.1} parent=1 // pred_region
      %63 = dma.done [#allocation6], 1024
    $region29: #{tpu_custom_call.1} parent=1 // pred_fallthru
      _
    // Predicated region
    $region30: #{tpu_custom_call.1} parent=1 // pred_check
      _
    $region31: #{tpu_custom_call.1} parent=1 // pred_check_branch
      %65 = sbr.rel (0) target = $region33
    $region32: #{tpu_custom_call.1} parent=1 // pred_region
      %67 = dma.done [#allocation6], 1024
    $region33: #{tpu_custom_call.1} parent=1 // pred_fallthru
      _
    %v68 = vld [vmem:[#allocation2] sm:$0xf]
    %v69 = vld [vmem:[#allocation2 + $0x4] sm:$0xf]
    %v70 = vld [vmem:[#allocation5] sm:$0xf]
    %v71 = vld [vmem:[#allocation5 + $0x4] sm:$0xf]
    %v72 = vld [vmem:[#allocation5 + $0x8] sm:$0xf]
    %v73 = vld [vmem:[#allocation5 + $0xc] sm:$0xf]
    %v74 = vld [vmem:[#allocation5 + $0x10] sm:$0xf]
    %v75 = vld [vmem:[#allocation5 + $0x14] sm:$0xf]
    %v76 = vld [vmem:[#allocation5 + $0x18] sm:$0xf]
    %v77 = vld [vmem:[#allocation5 + $0x1c] sm:$0xf]
    %v78 = vld [vmem:[#allocation5 + $0x20] sm:$0xf]
    %v79 = vld [vmem:[#allocation5 + $0x24] sm:$0xf]
    %v80 = vld [vmem:[#allocation5 + $0x28] sm:$0xf]
    %v81 = vld [vmem:[#allocation5 + $0x2c] sm:$0xf]
    %v82 = vld [vmem:[#allocation5 + $0x30] sm:$0xf]
    %v83 = vld [vmem:[#allocation5 + $0x34] sm:$0xf]
    %v84 = vld [vmem:[#allocation5 + $0x38] sm:$0xf]
    %v85 = vld [vmem:[#allocation5 + $0x3c] sm:$0xf]
    %v86 = vld [vmem:[%s2] sm:$0x1]
    %v88 = vperm.slane %v86, 0
    %v92 = vunpack.c.l.b16 %v68
    %v93 = vunpack.c.l.b16 %v69
    %v94 = vpack.c.b16 %v93, %v92
    %v112 = vunpack.c.l.b16 %v70
    %v113 = vunpack.c.l.b16 %v71
    %v114 = vunpack.c.l.b16 %v72
    %v115 = vunpack.c.l.b16 %v73
    %v116 = vunpack.c.l.b16 %v74
    %v117 = vunpack.c.l.b16 %v75
    %v118 = vunpack.c.l.b16 %v76
    %v119 = vunpack.c.l.b16 %v77
    %v120 = vunpack.c.l.b16 %v78
    %v121 = vunpack.c.l.b16 %v79
    %v122 = vunpack.c.l.b16 %v80
    %v123 = vunpack.c.l.b16 %v81
    %v124 = vunpack.c.l.b16 %v82
    %v125 = vunpack.c.l.b16 %v83
    %v126 = vunpack.c.l.b16 %v84
    %v127 = vunpack.c.l.b16 %v85
    %v128 = vpack.c.b16 %v113, %v112
    %v129 = vpack.c.b16 %v115, %v114
    %v130 = vpack.c.b16 %v117, %v116
    %v131 = vpack.c.b16 %v119, %v118
    %v132 = vpack.c.b16 %v121, %v120
    %v133 = vpack.c.b16 %v123, %v122
    %v134 = vpack.c.b16 %v125, %v124
    %v135 = vpack.c.b16 %v127, %v126
    %144 = vmatpush.bf16.msra.mxu0 %v135
    %145 = vmatpush.bf16.msra.mxu0 %v134
    %146 = vmatpush.bf16.msra.mxu0 %v133
    %147 = vmatpush.bf16.msra.mxu0 %v132
    %148 = vmatpush.bf16.msra.mxu0 %v131
    %149 = vmatpush.bf16.msra.mxu0 %v130
    %150 = vmatpush.bf16.msra.mxu0 %v129
    %151 = vmatpush.bf16.msra.mxu0 %v128
    %152 = vmatmul.bf16.gmra.mxu0 %v94
    %v153 = vpop.f32.mrf.mxu0
    %v154 = vadd.f32 %v88, %v153
    %v155 = vpop.f32.mrf.mxu0
    %v156 = vadd.f32 %v88, %v155
    %157 = vdwg.mxu0
    %v158 = vmax.f32 %v154, 0.0
    %v159 = vmax.f32 %v156, 0.0
    %v160 = vpack.c.bf16 %v159, %v158
    %v161 = vld [vmem:[#allocation7] sm:$0xf]
    %v162 = vld [vmem:[#allocation7 + $0x4] sm:$0xf]
    %v163 = vld [vmem:[#allocation7 + $0x8] sm:$0xf]
    %v164 = vld [vmem:[#allocation7 + $0xc] sm:$0xf]
    %v165 = vld [vmem:[#allocation7 + $0x10] sm:$0xf]
    %v166 = vld [vmem:[#allocation7 + $0x14] sm:$0xf]
    %v167 = vld [vmem:[#allocation7 + $0x18] sm:$0xf]
    %v168 = vld [vmem:[#allocation7 + $0x1c] sm:$0xf]
    %v169 = vld [vmem:[#allocation7 + $0x20] sm:$0xf]
    %v170 = vld [vmem:[#allocation7 + $0x24] sm:$0xf]
    %v171 = vld [vmem:[#allocation7 + $0x28] sm:$0xf]
    %v172 = vld [vmem:[#allocation7 + $0x2c] sm:$0xf]
    %v173 = vld [vmem:[#allocation7 + $0x30] sm:$0xf]
    %v174 = vld [vmem:[#allocation7 + $0x34] sm:$0xf]
    %v175 = vld [vmem:[#allocation7 + $0x38] sm:$0xf]
    %v176 = vld [vmem:[#allocation7 + $0x3c] sm:$0xf]
    %v177 = vld [vmem:[%s4] sm:$0x1]
    %v179 = vperm.slane %v177, 0
    %v197 = vunpack.c.l.b16 %v161
    %v198 = vunpack.c.l.b16 %v162
    %v199 = vunpack.c.l.b16 %v163
    %v200 = vunpack.c.l.b16 %v164
    %v201 = vunpack.c.l.b16 %v165
    %v202 = vunpack.c.l.b16 %v166
    %v203 = vunpack.c.l.b16 %v167
    %v204 = vunpack.c.l.b16 %v168
    %v205 = vunpack.c.l.b16 %v169
    %v206 = vunpack.c.l.b16 %v170
    %v207 = vunpack.c.l.b16 %v171
    %v208 = vunpack.c.l.b16 %v172
    %v209 = vunpack.c.l.b16 %v173
    %v210 = vunpack.c.l.b16 %v174
    %v211 = vunpack.c.l.b16 %v175
    %v212 = vunpack.c.l.b16 %v176
    %v213 = vpack.c.b16 %v198, %v197
    %v214 = vpack.c.b16 %v200, %v199
    %v215 = vpack.c.b16 %v202, %v201
    %v216 = vpack.c.b16 %v204, %v203
    %v217 = vpack.c.b16 %v206, %v205
    %v218 = vpack.c.b16 %v208, %v207
    %v219 = vpack.c.b16 %v210, %v209
    %v220 = vpack.c.b16 %v212, %v211
    %229 = vmatpush.bf16.msra.mxu0 %v220
    %230 = vmatpush.bf16.msra.mxu0 %v219
    %231 = vmatpush.bf16.msra.mxu0 %v218
    %232 = vmatpush.bf16.msra.mxu0 %v217
    %233 = vmatpush.bf16.msra.mxu0 %v216
    %234 = vmatpush.bf16.msra.mxu0 %v215
    %235 = vmatpush.bf16.msra.mxu0 %v214
    %236 = vmatpush.bf16.msra.mxu0 %v213
    %237 = vmatmul.bf16.gmra.mxu0 %v160
    %v238 = vpop.f32.mrf.mxu0
    %v239 = vadd.f32 %v179, %v238
    %v240 = vpop.f32.mrf.mxu0
    %v241 = vadd.f32 %v179, %v240
    %242 = vdwg.mxu0
    %243 = vst [vmem:[#allocation8] sm:$0xff] %v239
    %244 = vst [vmem:[#allocation8 + $0x8] sm:$0xff] %v241
    // Predicated region
    $region34: #{tpu_custom_call.1} parent=1 // pred_check
      _
    $region35: #{tpu_custom_call.1} parent=1 // pred_check_branch
      %246 = sbr.rel (0) target = $region37
    $region36: #{tpu_custom_call.1} parent=1 // pred_region
      %248 = vsyncadd [#allocation4], 0
      %s249 = sshll.u32 [#allocation8], 4
      %s250 = int_to_ptr.vmem [resolvable:$true] %s249
      %s251 = sshll.u32 %s5, 4
      %s252 = int_to_ptr.hbm [resolvable:$true] %s251
      %257 = dma.vmem_to_hbm [thread:$0]  %s250, 256, %s252, [#allocation4], 128, 128, 8
    $region37: #{tpu_custom_call.1} parent=1 // pred_fallthru
      _
    // Predicated region
    $region38: #{tpu_custom_call.1} parent=1 // pred_check
      _
    $region39: #{tpu_custom_call.1} parent=1 // pred_check_branch
      %259 = sbr.rel (0) target = $region41
    $region40: #{tpu_custom_call.1} parent=1 // pred_region
      %261 = dma.done [#allocation4], 256
    $region41: #{tpu_custom_call.1} parent=1 // pred_fallthru
      _
    %262 = vsyncpa [#allocation3], 1
    %263 = vsyncpa [#allocation6], 1
    %264 = vsyncpa [#allocation4], 1

</llo_original>
